<compile_context>
chip_gen: v6e
topology: v6e:2x2x1
jax: 0.10.0
libtpu: 0.0.40
codegen_flags: <defaults>
</compile_context>

<pallas_src>
import functools

import jax
import jax.numpy as jnp
from jax import lax
from jax.experimental import pallas as pl
from jax.experimental.pallas import tpu as pltpu

_MIB = 1024 * 1024


def _tebn_kernel(gamma_ref, beta_ref, x_ref, p_ref, o_ref, *, eps, cb, hw):
    """One grid step normalizes `cb` channels of the (NT, C*HW) slab.

    x_ref / o_ref block: (NT, cb*HW); channel j of the block occupies lanes
    [j*HW, (j+1)*HW).  gamma/beta: (C,) f32 scalars in SMEM.  p_ref: (NT, 1)
    per-row (time-step) scale, resident across grid steps.
    """
    cblk = pl.program_id(0)
    nt = x_ref.shape[0]
    inv_count = 1.0 / float(nt * hw)
    p_col = p_ref[...]                                    # (NT, 1) f32, hoisted

    def _process(c, col_slice):
        xc = x_ref[:, col_slice].astype(jnp.float32)      # (NT, HW)
        # Single-pass batch statistics (biased variance = torch BN training fwd).
        s = jnp.sum(xc)
        ss = jnp.sum(xc * xc)
        mean = s * inv_count
        var = jnp.maximum(ss * inv_count - mean * mean, 0.0)
        # Fused affine + mean-fold + per-timestep scale: y = x*s_col + b_col.
        s_col = (gamma_ref[c] * lax.rsqrt(var + eps)) * p_col   # (NT, 1)
        b_col = beta_ref[c] * p_col - mean * s_col              # (NT, 1)
        o_ref[:, col_slice] = (xc * s_col + b_col).astype(o_ref.dtype)

    if hw % 128 == 0:
        # Aligned per-channel lane slices: fori_loop bounds live ranges so only
        # one channel's partial reductions are live at a time (no vreg spills).
        def body(j, carry):
            _process(cblk * cb + j, pl.ds(pl.multiple_of(j * hw, 128), hw))
            return carry
        lax.fori_loop(0, cb, body, 0)
    else:
        # Unaligned per-channel slices: keep offsets static (masked loads, but
        # no dynamic-unaligned lane addressing).
        for j in range(cb):
            _process(cblk * cb + j, slice(j * hw, (j + 1) * hw))


def _vmem_capacity_bytes():
    try:
        return int(pltpu.get_tpu_info().vmem_capacity_bytes)
    except Exception:
        return 64 * _MIB                    # conservative (v7x-sized) default


def _pick_channels_per_block(C, NT, HW, itemsize, block_budget, min_steps):
    """Channels per grid step.

    Candidates must divide C and keep the block lane dim (cb*HW) 128-aligned
    (or span all channels).  Among candidates whose in+out double-buffered
    blocks fit `block_budget`, prefer the largest one that still leaves
    >= `min_steps` grid steps (pipelining / megacore sharding); otherwise the
    largest that fits; otherwise the smallest candidate (over budget).
    """
    cands = [cb for cb in range(1, C + 1)
             if C % cb == 0 and ((cb * HW) % 128 == 0 or cb == C)]
    if not cands:
        cands = [C]
    if HW % 128 != 0:
        # Per-channel slices are statically unrolled in this path -> cap size.
        capped = [cb for cb in cands if cb <= 16]
        cands = capped or [min(cands)]

    def block_bytes(cb):                    # in + out, double-buffered
        return 4 * NT * cb * HW * itemsize

    fitting = [cb for cb in cands if block_bytes(cb) <= block_budget]
    if fitting:
        pipelined = [cb for cb in fitting if C // cb >= min_steps]
        cb = max(pipelined) if pipelined else max(fitting)
    else:
        # TODO(synk): NT-tiled two-pass fallback (stats pass accumulating
        # per-channel sum/sumsq, then a normalize pass) for slabs whose
        # smallest aligned channel block exceeds the VMEM block budget.
        cb = min(cands)
    return cb, block_bytes(cb)


def tebn_forward(x, gamma, beta, p, eps=1e-5):
    """x: [N, T, C, H, W]; gamma/beta: [C]; p: [T] (T == 10 in the module)."""
    N, T, C, H, W = x.shape
    NT, HW = N * T, H * W

    # Native contiguous layout: pure reshape, no data movement.
    xk = x.reshape(NT, C * HW)

    # flatten(0,1) order is n-major / t-minor -> row i uses p[i % T].
    p_rows = jnp.tile(p.reshape(T).astype(jnp.float32), (N,)).reshape(NT, 1)

    # Generation-aware block budget / scoped-VMEM limit.
    vmem_cap = _vmem_capacity_bytes()
    if vmem_cap >= 100 * _MIB:
        # v5e / v6e: 128 MiB VMEM, single TensorCore -> big blocks, few steps.
        block_budget, vmem_limit, min_steps = 40 * _MIB, 64 * _MIB, 3
    else:
        # v7x-class: 64 MiB VMEM, 2 TCs share the "parallel" grid axis ->
        # capped blocks, keep >= 4 steps so each core still double-buffers.
        block_budget, vmem_limit, min_steps = 28 * _MIB, 52 * _MIB, 4

    itemsize = jnp.dtype(x.dtype).itemsize
    cb, blk_bytes = _pick_channels_per_block(C, NT, HW, itemsize,
                                             block_budget, min_steps)
    # Headroom for kernel intermediates (one channel's f32 working set) + misc.
    needed = blk_bytes + 4 * NT * HW * 4 + 2 * _MIB
    vmem_limit = int(min(max(vmem_limit, needed), max(vmem_cap - 8 * _MIB, 16 * _MIB)))

    grid = (C // cb,)
    kernel = functools.partial(_tebn_kernel, eps=float(eps), cb=cb, hw=HW)

    out = pl.pallas_call(
        kernel,
        out_shape=jax.ShapeDtypeStruct((NT, C * HW), x.dtype),
        grid=grid,
        in_specs=[
            pl.BlockSpec(memory_space=pltpu.SMEM),                 # gamma  (C,)
            pl.BlockSpec(memory_space=pltpu.SMEM),                 # beta   (C,)
            pl.BlockSpec((NT, cb * HW), lambda i: (0, i)),         # x      (NT, C*HW)
            pl.BlockSpec((NT, 1), lambda i: (0, 0)),               # p_rows (NT, 1), resident
        ],
        out_specs=pl.BlockSpec((NT, cb * HW), lambda i: (0, i)),
        compiler_params=pltpu.CompilerParams(
            dimension_semantics=("parallel",),
            vmem_limit_bytes=vmem_limit,
        ),
    )(gamma.astype(jnp.float32), beta.astype(jnp.float32), xk, p_rows)

    # Pure reshape back to [N, T, C, H, W].
    return out.reshape(N, T, C, H, W)


def tebn_reference(x, gamma, beta, p, eps=1e-5):
    N, T, C, H, W = x.shape
    xf = x.reshape(N * T, C, H, W).astype(jnp.float32)
    mean = xf.mean(axis=(0, 2, 3))
    var = xf.var(axis=(0, 2, 3))                   # biased, matches torch training fwd
    y = (xf - mean[None, :, None, None]) * lax.rsqrt(var + eps)[None, :, None, None]
    y = y * gamma[None, :, None, None] + beta[None, :, None, None]
    y = y.reshape(N, T, C, H, W) * p.reshape(1, T, 1, 1, 1)
    return y.astype(x.dtype)


if __name__ == "__main__":
    key = jax.random.PRNGKey(0)
    k_x, k_g, k_b, k_p = jax.random.split(key, 4)

    N, T, C, H, W = 2, 10, 4, 16, 16               # T=10 fixed by p's shape in __init__
    x = jax.random.normal(k_x, (N, T, C, H, W), dtype=jnp.float32)

    # Parameters (module __init__ gives: BN weight=1, bias=0, p=ones(10,...));
    # randomized here to exercise the broadcasts.
    gamma = 1.0 + 0.1 * jax.random.normal(k_g, (C,), dtype=jnp.float32)
    beta = 0.1 * jax.random.normal(k_b, (C,), dtype=jnp.float32)
    p = 1.0 + 0.1 * jax.random.normal(k_p, (T,), dtype=jnp.float32)

    out = tebn_forward(x, gamma, beta, p)
    out = jax.block_until_ready(out)

    ref = tebn_reference(x, gamma, beta, p)
    assert out.shape == (N, T, C, H, W)
    assert jnp.allclose(out, ref, atol=1e-4, rtol=1e-4)

    print("KERNEL_OK")
</pallas_src>

<mosaic_0001>
module attributes {stable_mosaic.version = 11 : i64} {
  func.func @_tebn_kernel(%arg0: i32, %arg1: memref<4xf32, #tpu.memory_space<smem>>, %arg2: memref<4xf32, #tpu.memory_space<smem>>, %arg3: memref<20x256xf32, #tpu.memory_space<vmem>>, %arg4: memref<20x1xf32, #tpu.memory_space<vmem>>, %arg5: memref<20x256xf32, #tpu.memory_space<vmem>>) attributes {dimension_semantics = [#tpu.dimension_semantics<parallel>], iteration_bounds = array<i64: 4>, scalar_prefetch = 0 : i64, scratch_operands = 0 : i64, tpu.core_type = #tpu.core_type<tc>, window_params = [{transform_indices = @transform_0, window_bounds = array<i64: 4>}, {transform_indices = @transform_1, window_bounds = array<i64: 4>}, {transform_indices = @transform_2, window_bounds = array<i64: 20, 256>}, {pipeline_mode = #tpu.pipeline_mode<synchronous>, transform_indices = @transform_3, window_bounds = array<i64: 20, 1>}, {transform_indices = @transform_4, window_bounds = array<i64: 20, 256>}]} {
    %c0 = arith.constant 0 : index
    %c0_0 = arith.constant 0 : index
    %0 = vector.load %arg4[%c0, %c0_0] : memref<20x1xf32, #tpu.memory_space<vmem>>, vector<20x1xf32>
    %c0_i32 = arith.constant 0 : i32
    %c1_i32 = arith.constant 1 : i32
    %1 = arith.muli %arg0, %c1_i32 : i32
    %2 = arith.addi %1, %c0_i32 : i32
    %c256_i32 = arith.constant 256 : i32
    %3 = arith.muli %c0_i32, %c256_i32 : i32
    %4 = tpu.assume_multiple %3, 128 : i32
    %c0_1 = arith.constant 0 : index
    %5 = arith.index_cast %4 : i32 to index
    %6 = vector.load %arg3[%c0_1, %5] : memref<20x256xf32, #tpu.memory_space<vmem>>, vector<20x256xf32>
    %7 = vector.shape_cast %6 : vector<20x256xf32> to vector<1x20x256xf32>
    %cst = arith.constant dense<0.000000e+00> : vector<1xf32>
    %8 = vector.multi_reduction <add>, %7, %cst [1, 2] : vector<1x20x256xf32> to vector<1xf32>
    %9 = vector.shape_cast %8 : vector<1xf32> to vector<1x1x1xf32>
    %10 = vector.extract %9[0, 0, 0] : f32 from vector<1x1x1xf32>
    %11 = arith.mulf %6, %6 : vector<20x256xf32>
    %12 = vector.shape_cast %11 : vector<20x256xf32> to vector<1x20x256xf32>
    %cst_2 = arith.constant dense<0.000000e+00> : vector<1xf32>
    %13 = vector.multi_reduction <add>, %12, %cst_2 [1, 2] : vector<1x20x256xf32> to vector<1xf32>
    %14 = vector.shape_cast %13 : vector<1xf32> to vector<1x1x1xf32>
    %15 = vector.extract %14[0, 0, 0] : f32 from vector<1x1x1xf32>
    %cst_3 = arith.constant 1.95312503E-4 : f32
    %16 = arith.mulf %10, %cst_3 : f32
    %cst_4 = arith.constant 1.95312503E-4 : f32
    %17 = arith.mulf %15, %cst_4 : f32
    %18 = arith.mulf %16, %16 : f32
    %19 = arith.subf %17, %18 : f32
    %cst_5 = arith.constant 0.000000e+00 : f32
    %20 = arith.maximumf %19, %cst_5 : f32
    %21 = arith.index_cast %2 : i32 to index
    %22 = memref.load %arg1[%21] : memref<4xf32, #tpu.memory_space<smem>>
    %cst_6 = arith.constant 9.99999974E-6 : f32
    %23 = arith.addf %20, %cst_6 : f32
    %24 = math.rsqrt %23 : f32
    %25 = arith.mulf %22, %24 : f32
    %26 = vector.broadcast %25 : f32 to vector<20x1xf32>
    %27 = arith.mulf %26, %0 : vector<20x1xf32>
    %28 = arith.index_cast %2 : i32 to index
    %29 = memref.load %arg2[%28] : memref<4xf32, #tpu.memory_space<smem>>
    %30 = vector.broadcast %29 : f32 to vector<20x1xf32>
    %31 = arith.mulf %30, %0 : vector<20x1xf32>
    %32 = vector.broadcast %16 : f32 to vector<20x1xf32>
    %33 = arith.mulf %32, %27 : vector<20x1xf32>
    %34 = arith.subf %31, %33 : vector<20x1xf32>
    %35 = vector.broadcast %27 : vector<20x1xf32> to vector<20x256xf32>
    %36 = arith.mulf %6, %35 : vector<20x256xf32>
    %37 = vector.broadcast %34 : vector<20x1xf32> to vector<20x256xf32>
    %38 = arith.addf %36, %37 : vector<20x256xf32>
    %c0_7 = arith.constant 0 : index
    %39 = arith.index_cast %4 : i32 to index
    %40 = vector.load %arg5[%c0_7, %39] : memref<20x256xf32, #tpu.memory_space<vmem>>, vector<20x256xf32>
    tpu.vector_store %arg5[%c0_7, %39], %38 {strides = array<i32>} : memref<20x256xf32, #tpu.memory_space<vmem>>, vector<20x256xf32>,
    %c1_i32_8 = arith.constant 1 : i32
    return
  }
  func.func @transform_0(%arg0: i32) -> i32 {
    %c0_i32 = arith.constant 0 : i32
    %c0_i32_0 = arith.constant 0 : i32
    return %c0_i32 : i32
  }
  func.func @transform_1(%arg0: i32) -> i32 {
    %c0_i32 = arith.constant 0 : i32
    %c0_i32_0 = arith.constant 0 : i32
    return %c0_i32 : i32
  }
  func.func @transform_2(%arg0: i32) -> (i32, i32) {
    %c0_i32 = arith.constant 0 : i32
    %c0_i32_0 = arith.constant 0 : i32
    return %c0_i32, %arg0 : i32, i32
  }
  func.func @transform_3(%arg0: i32) -> (i32, i32) {
    %c0_i32 = arith.constant 0 : i32
    %c0_i32_0 = arith.constant 0 : i32
    %c0_i32_1 = arith.constant 0 : i32
    return %c0_i32, %c0_i32_0 : i32, i32
  }
  func.func @transform_4(%arg0: i32) -> (i32, i32) {
    %c0_i32 = arith.constant 0 : i32
    %c0_i32_0 = arith.constant 0 : i32
    return %c0_i32, %arg0 : i32, i32
  }
}

</mosaic_0001>

<llo_original>
// kernel: tpu_custom_call.1
$region0: #{tpu_custom_call.1}
  #allocation0 [shape = 'u32[]', space=smem, size = 0x4, offset = 0x4, fixed_abs, tag = 'smem constant byte address 0x4 - core index']
  #allocation1 [shape = 'u32[144,128]{1,0:T(1,128)}', space=vmem, size = 0x12000, scoped, tag = 'internal scratch']
  %s0 = inlined_call_operand.vmem [shape: f32[4], index: 0, kind: input, shape index: {}]
  %s1 = inlined_call_operand.vmem [shape: f32[4], index: 1, kind: input, shape index: {}]
  %s2 = inlined_call_operand.hbm [shape: f32[20,1024], index: 2, kind: input, shape index: {}]
  %s3 = inlined_call_operand.vmem [shape: f32[20,1], index: 3, kind: input, shape index: {}]
  %s4 = inlined_call_operand.hbm [shape: f32[20,1024], index: 4, kind: output, shape index: {}]
  %s5 = sld [smem:[#allocation0]]
  $region61: #{tpu_custom_call.1} parent=0
    _
  %s7 = ssub.s32 1, %s5
  %s8 = scalar_select 0, %s7, %s5
  $region1: #{tpu_custom_call.1} parent=0
    #allocation2 [shape = 'u8[512]{0}', space=smem, size = 0x200, scoped, tag = 'input window, operand 0, single buffered']
    #allocation3 [shape = 's32[2]{0}', space=sflag, size = 0x8, scoped, tag = 'scoped memory for tpu_custom_call.1']
    #allocation4 [shape = 's32[2]{0}', space=sflag, size = 0x8, scoped, tag = 'scoped memory for tpu_custom_call.1']
    #allocation5 [shape = 's32[2]{0}', space=sflag, size = 0x8, scoped, tag = 'scoped memory for tpu_custom_call.1']
    #allocation6 [shape = 'u8[512]{0}', space=smem, size = 0x200, scoped, tag = 'input window, operand 1, single buffered']
    #allocation7 [shape = 's32[1]{0}', space=sflag, size = 0x4, scoped, tag = 'scoped memory for tpu_custom_call.1']
    #allocation8 [shape = 'u8[49152]{0}', space=vmem, size = 0xc000, scoped, tag = 'input window, operand 2']
    #allocation9 [shape = 'u8[49152]{0}', space=vmem, size = 0xc000, scoped, tag = 'output window, operand 0']
    %9 = vsyncpa [#allocation5], 0
    %10 = vsyncpa [#allocation7], 0
    %11 = vsyncpa [#allocation3], 0
    %s12 = scalar_lea.sflag [#allocation3], 1
    %13 = vsyncpa %s12, 0
    %14 = vsyncpa [#allocation4], 0
    %s15 = scalar_lea.sflag [#allocation4], 1
    %16 = vsyncpa %s15, 0
    loop: start=0, step=1, limit=6
    $region2: #{tpu_custom_call.1} parent=1 // loop_pre_header
      _
    $region3: #{tpu_custom_call.1} parent=1 // loop_header
      %s18 = sphi 0, %s22
      %p19 = scmp.ge.s32.totalorder %s18, 6
      %s26 = sphi 0, %s26
      %s28 = sphi 0, %s26
      %s29 = sphi 0, %s28
      %s43 = sphi 0, %s29
      %s47 = sphi 0, %s47
      %s49 = sphi 0, %s47
      %s50 = sphi 0, %s49
      %s64 = sphi 0, %s50
      %s70 = sphi 0, %s72
      %s73 = sphi 0, %s70
      %s74 = sphi 0, %s73
      %s90 = sphi 0, %s74
      %s94 = sphi 0, %s94
      %s96 = sphi 0, %s94
      %s97 = sphi 0, %s96
      %s111 = sphi 0, %s97
      %s117 = sphi 0, %s119
      %s120 = sphi 0, %s117
      %s121 = sphi 0, %s120
      %s137 = sphi 0, %s121
    $region4: #{tpu_custom_call.1} parent=1 // loop_header_branch
      %21 = sbr.rel (%p19) target = $region8
    $region5: #{tpu_custom_call.1} parent=1 // loop_body
      %s23 = ssub.s32 %s18, 1
      %s24 = ssub.s32 %s18, 2
      %s25 = sadd.s32 %s18, 1
      %s27 = sadd.s32 %s26, 1
      %p30 = scmp.eq.s32.totalorder %s18, 3
      %p31 = scmp.ne.s32.totalorder %s26, %s28
      %p32 = scmp.eq.s32.totalorder %s18, 0
      %p33 = por %p31, %p32
      %p34 = scmp.ne.s32.totalorder %s26, %s28
      %p35 = scmp.eq.s32.totalorder %s23, 3
      %p36 = por %p34, %p35
      %p37 = scmp.ne.s32.totalorder %s28, %s29
      %p38 = scmp.eq.s32.totalorder %s23, 0
      %p39 = por %p37, %p38
      %p40 = scmp.ne.s32.totalorder %s28, %s29
      %p41 = scmp.eq.s32.totalorder %s24, 3
      %p42 = por %p40, %p41
      %p44 = scmp.ne.s32.totalorder %s29, %s43
      %p45 = scmp.eq.s32.totalorder %s24, 0
      %p46 = por %p44, %p45
      %s48 = sadd.s32 %s47, 1
      %p51 = scmp.eq.s32.totalorder %s18, 3
      %p52 = scmp.ne.s32.totalorder %s47, %s49
      %p53 = scmp.eq.s32.totalorder %s18, 0
      %p54 = por %p52, %p53
      %p55 = scmp.ne.s32.totalorder %s47, %s49
      %p56 = scmp.eq.s32.totalorder %s23, 3
      %p57 = por %p55, %p56
      %p58 = scmp.ne.s32.totalorder %s49, %s50
      %p59 = scmp.eq.s32.totalorder %s23, 0
      %p60 = por %p58, %p59
      %p61 = scmp.ne.s32.totalorder %s49, %s50
      %p62 = scmp.eq.s32.totalorder %s24, 3
      %p63 = por %p61, %p62
      %p65 = scmp.ne.s32.totalorder %s50, %s64
      %p66 = scmp.eq.s32.totalorder %s24, 0
      %p67 = por %p65, %p66
      %s68 = ssub.s32 %s18, %s25
      %p69 = scmp.eq.s32.totalorder %s68, 0
      %s71 = sadd.s32 %s70, 1
      %s72 = scalar_select %p69, %s70, %s71
      %p75 = pneg %p69
      %p76 = scmp.eq.s32.totalorder %s18, 3
      %p77 = por %p75, %p76
      %p78 = scmp.ne.s32.totalorder %s70, %s73
      %p79 = scmp.eq.s32.totalorder %s18, 0
      %p80 = por %p78, %p79
      %p81 = scmp.ne.s32.totalorder %s70, %s73
      %p82 = scmp.eq.s32.totalorder %s23, 3
      %p83 = por %p81, %p82
      %p84 = scmp.ne.s32.totalorder %s73, %s74
      %p85 = scmp.eq.s32.totalorder %s23, 0
      %p86 = por %p84, %p85
      %p87 = scmp.ne.s32.totalorder %s73, %s74
      %p88 = scmp.eq.s32.totalorder %s24, 3
      %p89 = por %p87, %p88
      %p91 = scmp.ne.s32.totalorder %s74, %s90
      %p92 = scmp.eq.s32.totalorder %s24, 0
      %p93 = por %p91, %p92
      %s95 = sadd.s32 %s94, 1
      %p98 = scmp.eq.s32.totalorder %s18, 3
      %p99 = scmp.ne.s32.totalorder %s94, %s96
      %p100 = scmp.eq.s32.totalorder %s18, 0
      %p101 = por %p99, %p100
      %p102 = scmp.ne.s32.totalorder %s94, %s96
      %p103 = scmp.eq.s32.totalorder %s23, 3
      %p104 = por %p102, %p103
      %p105 = scmp.ne.s32.totalorder %s96, %s97
      %p106 = scmp.eq.s32.totalorder %s23, 0
      %p107 = por %p105, %p106
      %p108 = scmp.ne.s32.totalorder %s96, %s97
      %p109 = scmp.eq.s32.totalorder %s24, 3
      %p110 = por %p108, %p109
      %p112 = scmp.ne.s32.totalorder %s97, %s111
      %p113 = scmp.eq.s32.totalorder %s24, 0
      %p114 = por %p112, %p113
      %s115 = ssub.s32 %s18, %s25
      %p116 = scmp.eq.s32.totalorder %s115, 0
      %s118 = sadd.s32 %s117, 1
      %s119 = scalar_select %p116, %s117, %s118
      %p122 = pneg %p116
      %p123 = scmp.eq.s32.totalorder %s18, 3
      %p124 = por %p122, %p123
      %p125 = scmp.ne.s32.totalorder %s117, %s120
      %p126 = scmp.eq.s32.totalorder %s18, 0
      %p127 = por %p125, %p126
      %p128 = scmp.ne.s32.totalorder %s117, %s120
      %p129 = scmp.eq.s32.totalorder %s23, 3
      %p130 = por %p128, %p129
      %p131 = scmp.ne.s32.totalorder %s120, %s121
      %p132 = scmp.eq.s32.totalorder %s23, 0
      %p133 = por %p131, %p132
      %p134 = scmp.ne.s32.totalorder %s120, %s121
      %p135 = scmp.eq.s32.totalorder %s24, 3
      %p136 = por %p134, %p135
      %p138 = scmp.ne.s32.totalorder %s121, %s137
      %p139 = scmp.eq.s32.totalorder %s24, 0
      %p140 = por %p138, %p139
      %p141 = scmp.le.s32.totalorder 1, %s18
      %p142 = scmp.lt.s32.totalorder %s18, 5
      %p143 = pnand %p141, %p142
      %p144 = pneg %p143
      // Predicated region
      $region9: #{tpu_custom_call.1} parent=5 // pred_check
        _
      $region10: #{tpu_custom_call.1} parent=5 // pred_check_branch
        %146 = sbr.rel (%p143) target = $region12
      $region11: #{tpu_custom_call.1} parent=5 // pred_region
        %s147 = ssub.s32 %s18, 1
        // Predicated region
        $region13: #{tpu_custom_call.1} parent=11 // pred_check
          %p148 = pneg %p39
        $region14: #{tpu_custom_call.1} parent=11 // pred_check_branch
          %150 = sbr.rel (%p148) target = $region16
        $region15: #{tpu_custom_call.1} parent=11 // pred_region
          %s152 = ssub.s32 16, 16
          %153 = vsyncadd [#allocation5], %s152
          %s155 = sshll.u32 %s0, 4
          %s156 = int_to_ptr.vmem [resolvable:$true] %s155
          %158 = dma.vmem_to_smem %s156, 16, [#allocation2], [#allocation5]
        $region16: #{tpu_custom_call.1} parent=11 // pred_fallthru
          _
        // Predicated region
        $region17: #{tpu_custom_call.1} parent=11 // pred_check
          %p159 = pneg %p60
        $region18: #{tpu_custom_call.1} parent=11 // pred_check_branch
          %161 = sbr.rel (%p159) target = $region20
        $region19: #{tpu_custom_call.1} parent=11 // pred_region
          %s163 = ssub.s32 16, 16
          %164 = vsyncadd [#allocation7], %s163
          %s166 = sshll.u32 %s1, 4
          %s167 = int_to_ptr.vmem [resolvable:$true] %s166
          %169 = dma.vmem_to_smem %s167, 16, [#allocation6], [#allocation7]
        $region20: #{tpu_custom_call.1} parent=11 // pred_fallthru
          _
        // Predicated region
        $region21: #{tpu_custom_call.1} parent=11 // pred_check
          %p170 = pneg %p107
        $region22: #{tpu_custom_call.1} parent=11 // pred_check_branch
          %172 = sbr.rel (%p170) target = $region24
        $region23: #{tpu_custom_call.1} parent=11 // pred_region
          _
        $region24: #{tpu_custom_call.1} parent=11 // pred_fallthru
          _
      $region12: #{tpu_custom_call.1} parent=5 // pred_fallthru
        _
      %p173 = scmp.lt.s32.totalorder %s18, 4
      // Predicated region
      $region25: #{tpu_custom_call.1} parent=5 // pred_check
        %p174 = pneg %p173
      $region26: #{tpu_custom_call.1} parent=5 // pred_check_branch
        %176 = sbr.rel (%p174) target = $region28
      $region27: #{tpu_custom_call.1} parent=5 // pred_region
        // Predicated region
        $region29: #{tpu_custom_call.1} parent=27 // pred_check
          %p177 = pneg %p80
        $region30: #{tpu_custom_call.1} parent=27 // pred_check_branch
          %179 = sbr.rel (%p177) target = $region32
        $region31: #{tpu_custom_call.1} parent=27 // pred_region
          %s180 = sand.u32 %s70, 1
          %s181 = scalar_lea.sflag [#allocation3], %s180
          %s182 = sand.u32 %s70, 1
          %s183 = smul.addr %s182, 48
          %s184 = scalar_lea.vmem [#allocation8], %s183
          %s185 = smul.u32 2, %s18
          %s187 = ssub.s32 768, 768
          %188 = vsyncadd %s181, %s187
          %s189 = smul.addr %s185, 128
          %s190 = scalar_lea.hbm %s2, %s189
          %s191 = sshll.u32 %s184, 4
          %s192 = int_to_ptr.vmem [resolvable:$true] %s191
          %197 = dma.hbm_to_vmem [thread:$0]  %s190, 768, %s192, %s181, 1024, 256, 16
        $region32: #{tpu_custom_call.1} parent=27 // pred_fallthru
          _
      $region28: #{tpu_custom_call.1} parent=5 // pred_fallthru
        _
      %p198 = scmp.le.s32.totalorder 1, %s18
      %p199 = scmp.lt.s32.totalorder %s18, 5
      %p200 = pnand %p198, %p199
      %p201 = pneg %p200
      // Predicated region
      $region33: #{tpu_custom_call.1} parent=5 // pred_check
        _
      $region34: #{tpu_custom_call.1} parent=5 // pred_check_branch
        %203 = sbr.rel (%p200) target = $region36
      $region35: #{tpu_custom_call.1} parent=5 // pred_region
        %s204 = ssub.s32 %s18, 1
        // Predicated region
        $region37: #{tpu_custom_call.1} parent=35 // pred_check
          %p205 = pneg %p39
        $region38: #{tpu_custom_call.1} parent=35 // pred_check_branch
          %207 = sbr.rel (%p205) target = $region40
        $region39: #{tpu_custom_call.1} parent=35 // pred_region
          %208 = dma.done [#allocation5], 16
        $region40: #{tpu_custom_call.1} parent=35 // pred_fallthru
          _
        // Predicated region
        $region41: #{tpu_custom_call.1} parent=35 // pred_check
          %p209 = pneg %p60
        $region42: #{tpu_custom_call.1} parent=35 // pred_check_branch
          %211 = sbr.rel (%p209) target = $region44
        $region43: #{tpu_custom_call.1} parent=35 // pred_region
          %212 = dma.done [#allocation7], 16
        $region44: #{tpu_custom_call.1} parent=35 // pred_fallthru
          _
        %s213 = sand.u32 %s73, 1
        %s214 = scalar_lea.sflag [#allocation3], %s213
        %s215 = sand.u32 %s73, 1
        %s216 = smul.addr %s215, 48
        %s217 = scalar_lea.vmem [#allocation8], %s216
        // Predicated region
        $region45: #{tpu_custom_call.1} parent=35 // pred_check
          %p218 = pneg %p86
        $region46: #{tpu_custom_call.1} parent=35 // pred_check_branch
          %220 = sbr.rel (%p218) target = $region48
        $region47: #{tpu_custom_call.1} parent=35 // pred_region
          %221 = dma.done %s214, 768
        $region48: #{tpu_custom_call.1} parent=35 // pred_fallthru
          _
        %222 = sfence
        %p223 = pneg %p39
        %p224 = pneg %p36
        %p225 = pneg %p60
        %p226 = pneg %p57
        %s227 = sand.u32 %s73, 1
        %s228 = scalar_lea.sflag [#allocation3], %s227
        %s229 = sand.u32 %s73, 1
        %s230 = smul.addr %s229, 48
        %s231 = scalar_lea.vmem [#allocation8], %s230
        %p232 = pneg %p86
        %p233 = pneg %p83
        %p234 = pneg %p107
        %p235 = pneg %p104
        %p236 = pneg %p133
        %p237 = pneg %p130
        %s238 = sand.u32 %s120, 1
        %s239 = scalar_lea.sflag [#allocation4], %s238
        %s240 = sand.u32 %s120, 1
        %s241 = smul.addr %s240, 48
        %s242 = scalar_lea.vmem [#allocation9], %s241
        %s243 = smul.u32 2, %s23
        %s244 = smul.u32 2, %s23
        %v245 = vld [vmem:[%s3] sm:$0xff]
        %v246 = vld [vmem:[%s3 + $0x8] sm:$0xff]
        %v247 = vld [vmem:[%s3 + $0x10] sm:$0xf]
        %v248 = vld [vmem:[%s217] sm:$0xff]
        %v249 = vld [vmem:[%s217 + $0x8] sm:$0xff]
        %v250 = vld [vmem:[%s217 + $0x10] sm:$0xff]
        %v251 = vld [vmem:[%s217 + $0x18] sm:$0xff]
        %v252 = vld [vmem:[%s217 + $0x20] sm:$0xf]
        %v253 = vld [vmem:[%s217 + $0x28] sm:$0xf]
        %v254 = vadd.f32 %v248, %v249
        %v255 = vadd.f32 %v254, %v250
        %v256 = vadd.f32 %v255, %v251
        %vm257 = vcmask 1043456
        %v258 = vsel %vm257, %v252, 0.0
        %v259 = vadd.f32 %v256, %v258
        %v260 = vsel %vm257, %v253, 0.0
        %v261 = vadd.f32 %v259, %v260
        %262 = vadd.xlane.f32.xlu0 %v261
        %v263 = vpop.xlane.xlu0 %262
        %v264 = vrot.slane %v263, 4
        %v265 = vadd.f32 %v263, %v264
        %v266 = vrot.slane %v265, 2
        %v267 = vadd.f32 %v265, %v266
        %v268 = vrot.slane %v267, 1
        %v269 = vadd.f32 %v267, %v268
        %s270 = vtos %v269
        %v271 = vmul.f32 %v248, %v248
        %v272 = vmul.f32 %v249, %v249
        %v273 = vmul.f32 %v250, %v250
        %v274 = vmul.f32 %v251, %v251
        %v275 = vmul.f32 %v252, %v252
        %v276 = vmul.f32 %v253, %v253
        %v277 = vadd.f32 %v271, %v272
        %v278 = vadd.f32 %v277, %v273
        %v279 = vadd.f32 %v278, %v274
        %v280 = vsel %vm257, %v275, 0.0
        %v281 = vadd.f32 %v279, %v280
        %v282 = vsel %vm257, %v276, 0.0
        %v283 = vadd.f32 %v281, %v282
        %284 = vadd.xlane.f32.xlu0 %v283
        %v285 = vpop.xlane.xlu0 %284
        %v286 = vrot.slane %v285, 4
        %v287 = vadd.f32 %v285, %v286
        %v288 = vrot.slane %v287, 2
        %v289 = vadd.f32 %v287, %v288
        %v290 = vrot.slane %v289, 1
        %v291 = vadd.f32 %v289, %v290
        %s292 = vtos %v291
        %s293 = smul.f32 %s270, 0.0001953125
        %s294 = smul.f32 %s292, 0.0001953125
        %s295 = smul.f32 %s293, %s293
        %s296 = ssub.f32 %s294, %s295
        %s297 = smax.f32 %s296, 0.0
        %s298 = sld [smem:[#allocation2 + %s23]]
        %s299 = sadd.f32 %s297, 1e-05
        %v300 = vstv %s299
        %v301 = vrsqrt.pop %v300
        %s302 = vtos %v301
        %s303 = smul.f32 %s298, %s302
        %v304 = vstv %s303
        %v305 = vmul.f32 %v304, %v245
        %v306 = vmul.f32 %v304, %v246
        %v307 = vmul.f32 %v304, %v247
        %s308 = sld [smem:[#allocation6 + %s23]]
        %v309 = vstv %s308
        %v310 = vmul.f32 %v309, %v245
        %v311 = vmul.f32 %v309, %v246
        %v312 = vmul.f32 %v309, %v247
        %v313 = vstv %s293
        %v314 = vmul.f32 %v313, %v305
        %v315 = vmul.f32 %v313, %v306
        %v316 = vmul.f32 %v313, %v307
        %v317 = vsub.f32 %v310, %v314
        %v318 = vsub.f32 %v311, %v315
        %v319 = vsub.f32 %v312, %v316
        %321 = vset.pattern.permute.xlu0 0
        %322 = vperm.xlu0 %321, %v305
        %v323 = vpop.permute.xlu0 %322
        %326 = vset.pattern.permute.xlu0 0
        %327 = vperm.xlu0 %326, %v306
        %v328 = vpop.permute.xlu0 %327
        %331 = vset.pattern.permute.xlu0 0
        %332 = vperm.xlu0 %331, %v307
        %v333 = vpop.permute.xlu0 %332
        %v335 = vmul.f32 %v248, %v323
        %v336 = vmul.f32 %v249, %v323
        %v337 = vmul.f32 %v250, %v328
        %v338 = vmul.f32 %v251, %v328
        %v339 = vmul.f32 %v252, %v333
        %v340 = vmul.f32 %v253, %v333
        %342 = vset.pattern.permute.xlu0 0
        %343 = vperm.xlu0 %342, %v317
        %v344 = vpop.permute.xlu0 %343
        %347 = vset.pattern.permute.xlu0 0
        %348 = vperm.xlu0 %347, %v318
        %v349 = vpop.permute.xlu0 %348
        %352 = vset.pattern.permute.xlu0 0
        %353 = vperm.xlu0 %352, %v319
        %v354 = vpop.permute.xlu0 %353
        %v356 = vadd.f32 %v335, %v344
        %v357 = vadd.f32 %v336, %v344
        %v358 = vadd.f32 %v337, %v349
        %v359 = vadd.f32 %v338, %v349
        %v360 = vadd.f32 %v339, %v354
        %v361 = vadd.f32 %v340, %v354
        %362 = vst [vmem:[%s242] sm:$0xff] %v356
        %363 = vst [vmem:[%s242 + $0x8] sm:$0xff] %v357
        %364 = vst [vmem:[%s242 + $0x10] sm:$0xff] %v358
        %365 = vst [vmem:[%s242 + $0x18] sm:$0xff] %v359
        %366 = vst [vmem:[%s242 + $0x20] sm:$0xf] %v360
        %367 = vst [vmem:[%s242 + $0x28] sm:$0xf] %v361
        %s368 = sand.u32 %s120, 1
        %s369 = scalar_lea.sflag [#allocation4], %s368
        %s370 = sand.u32 %s120, 1
        %s371 = smul.addr %s370, 48
        %s372 = scalar_lea.vmem [#allocation9], %s371
        // Predicated region
        $region49: #{tpu_custom_call.1} parent=35 // pred_check
          %p373 = pneg %p130
        $region50: #{tpu_custom_call.1} parent=35 // pred_check_branch
          %375 = sbr.rel (%p373) target = $region52
        $region51: #{tpu_custom_call.1} parent=35 // pred_region
          %s376 = smul.u32 2, %s23
          %s378 = ssub.s32 768, 768
          %379 = vsyncadd %s369, %s378
          %s380 = smul.addr %s376, 128
          %s381 = scalar_lea.hbm %s4, %s380
          %s382 = sshll.u32 %s372, 4
          %s383 = int_to_ptr.vmem [resolvable:$true] %s382
          %388 = dma.vmem_to_hbm [thread:$0]  %s383, 768, %s381, %s369, 256, 1024, 16
        $region52: #{tpu_custom_call.1} parent=35 // pred_fallthru
          _
      $region36: #{tpu_custom_call.1} parent=5 // pred_fallthru
        _
      %p389 = scmp.le.s32.totalorder 2, %s18
      // Predicated region
      $region53: #{tpu_custom_call.1} parent=5 // pred_check
        %p390 = pneg %p389
      $region54: #{tpu_custom_call.1} parent=5 // pred_check_branch
        %392 = sbr.rel (%p390) target = $region56
      $region55: #{tpu_custom_call.1} parent=5 // pred_region
        %s393 = ssub.s32 %s18, 2
        // Predicated region
        $region57: #{tpu_custom_call.1} parent=55 // pred_check
          %p394 = pneg %p136
        $region58: #{tpu_custom_call.1} parent=55 // pred_check_branch
          %396 = sbr.rel (%p394) target = $region60
        $region59: #{tpu_custom_call.1} parent=55 // pred_region
          %s397 = sand.u32 %s121, 1
          %s398 = scalar_lea.sflag [#allocation4], %s397
          %s399 = sand.u32 %s121, 1
          %s400 = smul.addr %s399, 48
          %s401 = scalar_lea.vmem [#allocation9], %s400
          %402 = dma.done %s398, 768
        $region60: #{tpu_custom_call.1} parent=55 // pred_fallthru
          _
      $region56: #{tpu_custom_call.1} parent=5 // pred_fallthru
        _
    $region6: #{tpu_custom_call.1} parent=1 // loop_footer
      %s22 = sadd.s32 1, %s18
    $region7: #{tpu_custom_call.1} parent=1 // loop_footer_branch
      %17 = sbr.rel target = $region3
    $region8: #{tpu_custom_call.1} parent=1 // loop_exit
      _
    %403 = vsyncpa [#allocation3], 1
    %s404 = scalar_lea.sflag [#allocation3], 1
    %405 = vsyncpa %s404, 1
    %406 = vsyncpa [#allocation4], 1
    %s407 = scalar_lea.sflag [#allocation4], 1
    %408 = vsyncpa %s407, 1
    %409 = vsyncpa [#allocation5], 1
    %s410 = scalar_lea.sflag [#allocation5], 1
    %411 = vsyncpa %s410, 1
    %412 = vsyncpa [#allocation7], 1

</llo_original>
